<compile_context>
chip_gen: v7x
topology: tpu7x:2x2x1
jax: 0.10.0
libtpu: 0.0.40
codegen_flags: <defaults>
</compile_context>

<pallas_src>
import jax
import jax.numpy as jnp
from jax.experimental import pallas as pl
from jax.experimental.pallas import tpu as pltpu

LN_EPS = 1e-5          # torch.nn.LayerNorm default
_C_CHUNK = 512         # one-hot gather chunk along the class axis
_MiB = 1024 * 1024


def _round_up(x, m):
    return (x + m - 1) // m * m


def _vmem_capacity_bytes():
    """Physical VMEM of the local TPU generation (fallback: v7x-conservative)."""
    try:
        return int(pltpu.get_tpu_info().vmem_capacity_bytes)
    except Exception:
        return 64 * _MiB


_VMEM_CAP_BYTES = _vmem_capacity_bytes()
# Residency gate: the table is double-buffered by the default pipeline even
# though its block index is constant, so keep 2*table under half of VMEM
# (=> ~32 MiB tables on v5e/v6e, ~16 MiB on v7x).
_TABLE_VMEM_LIMIT_BYTES = _VMEM_CAP_BYTES // 4


def _ln_and_head(e, consts_ref, wg_ref, bias_ref, x_ref, u_ref):
    """LayerNorm + sigmoid(Linear) epilogue on a (TB, D) f32 tile.

    consts_ref: (2, D) rows [gamma; beta].
    wg_ref:     (D, 1) head weight with LN gamma folded in (gamma * w).
    bias_ref:   (1,) SMEM scalar = b + dot(w, beta).
    """
    d = e.shape[-1]
    inv_d = 1.0 / d
    # Single-pass statistics: two independent lane reductions (overlap on XLU).
    s1 = jnp.sum(e, axis=-1, keepdims=True)            # (TB, 1)
    s2 = jnp.sum(e * e, axis=-1, keepdims=True)        # (TB, 1)
    mean = s1 * inv_d
    var = s2 * inv_d - mean * mean
    rstd = jax.lax.rsqrt(var + LN_EPS)
    normed = (e - mean) * rstd                         # (TB, D)

    gamma = consts_ref[0:1, :]                         # (1, D)
    beta = consts_ref[1:2, :]                          # (1, D)
    x = normed * gamma + beta
    x_ref[...] = x.astype(x_ref.dtype)

    # Uncertainty head on the (otherwise idle) MXU; LN affine already folded
    # into wg / bias by the wrapper, so no extra (TB, D) VPU multiply here.
    logit = jnp.dot(normed, wg_ref[...],
                    preferred_element_type=jnp.float32) + bias_ref[0]
    u_ref[...] = jax.nn.sigmoid(logit).astype(u_ref.dtype)


def _embed_ln_head_kernel(labels_ref,   # (TB, 1) int32 labels tile (VMEM)
                          table_ref,    # (C, D) full embedding table (VMEM)
                          consts_ref,   # (2, D) [gamma; beta]
                          wg_ref,       # (D, 1) folded head weight
                          bias_ref,     # (1,) f32 folded bias (SMEM)
                          x_ref,        # (TB, D) out
                          u_ref):       # (TB, 1) out
    labels = labels_ref[...]                           # (TB, 1)
    tb = labels.shape[0]
    c, d = table_ref.shape

    # Gather as a chunked one-hot matmul on the MXU.  Chunking over the class
    # axis keeps the one-hot temp at <= (TB, 512) f32.
    e = None
    for c0 in range(0, c, _C_CHUNK):
        cs = min(_C_CHUNK, c - c0)
        ids = jax.lax.broadcasted_iota(jnp.int32, (tb, cs), 1) + c0
        one_hot = (labels == ids).astype(jnp.float32)          # (TB, cs)
        part = jnp.dot(one_hot,
                       table_ref[c0:c0 + cs, :].astype(jnp.float32),
                       preferred_element_type=jnp.float32)     # (TB, D)
        e = part if e is None else e + part

    _ln_and_head(e, consts_ref, wg_ref, bias_ref, x_ref, u_ref)


def _ln_head_kernel(rows_ref,    # (TB, D) pre-gathered embedding rows
                    consts_ref,  # (2, D)
                    wg_ref,      # (D, 1)
                    bias_ref,    # (1,) SMEM
                    x_ref,       # (TB, D)
                    u_ref):      # (TB, 1)
    _ln_and_head(rows_ref[...].astype(jnp.float32),
                 consts_ref, wg_ref, bias_ref, x_ref, u_ref)


@jax.jit
def improved_semantic_embedding(class_labels, emb_table, ln_gamma, ln_beta,
                                unc_w, unc_b):
    """class_labels: (B,) int.  Returns (x: (B, D) f32, uncertainty: (B, 1) f32)."""
    B = class_labels.shape[0]
    C, D = emb_table.shape

    # Batch tile: multiple of 8 sublanes, up to 1024 rows, sized so that a
    # 2-TensorCore part (v7x) gets at least two grid steps whenever B allows.
    B8 = _round_up(max(B, 1), 8)
    TB = min(1024, _round_up((B8 + 1) // 2, 8))
    B_pad = _round_up(B, TB)
    n_tiles = B_pad // TB

    labels = class_labels.astype(jnp.int32)
    if B_pad != B:
        labels = jnp.pad(labels, (0, B_pad - B))   # pad with class 0 (valid)
    labels2 = labels.reshape(B_pad, 1)

    gamma = ln_gamma.astype(jnp.float32)
    beta = ln_beta.astype(jnp.float32)
    w = unc_w.astype(jnp.float32).reshape(-1)
    consts = jnp.stack([gamma, beta])                          # (2, D)
    # Fold LN affine into the head:  w.(g*n + b) + b0 = (w*g).n + (w.b + b0)
    wg = (w * gamma).reshape(D, 1)                             # (D, 1)
    bias = (unc_b.reshape(()).astype(jnp.float32)
            + jnp.dot(w, beta)).reshape(1).astype(jnp.float32)

    out_shape = (jax.ShapeDtypeStruct((B_pad, D), jnp.float32),
                 jax.ShapeDtypeStruct((B_pad, 1), jnp.float32))
    out_specs = (pl.BlockSpec((TB, D), lambda i: (i, 0)),
                 pl.BlockSpec((TB, 1), lambda i: (i, 0)))

    table_bytes = C * D * emb_table.dtype.itemsize
    x_tile_bytes = TB * D * 4
    out_bytes = B_pad * D * 4 + B_pad * 4
    const_bytes = (consts.size + wg.size + 1) * 4

    if table_bytes <= _TABLE_VMEM_LIMIT_BYTES:
        # Fast path: whole table VMEM-resident; gather via chunked one-hot matmul.
        need = (2 * table_bytes                       # table (double-buffered)
                + 2 * x_tile_bytes                    # x out tiles
                + TB * min(C, _C_CHUNK) * 4           # one-hot temp
                + 4 * TB * 4 + const_bytes + 4 * _MiB)
        vmem_limit = min(int(_VMEM_CAP_BYTES * 0.9), max(need, 32 * _MiB))
        cparams = pltpu.CompilerParams(
            dimension_semantics=("parallel",), vmem_limit_bytes=vmem_limit)
        cost = pl.CostEstimate(
            flops=2 * B_pad * C * D + 2 * B_pad * D + 8 * B_pad * D,
            transcendentals=2 * B_pad,
            bytes_accessed=table_bytes + B_pad * 4 + const_bytes + out_bytes)
        x_pad, u_pad = pl.pallas_call(
            _embed_ln_head_kernel,
            out_shape=out_shape,
            grid=(n_tiles,),
            in_specs=[
                pl.BlockSpec((TB, 1), lambda i: (i, 0)),   # labels tile
                pl.BlockSpec((C, D), lambda i: (0, 0)),    # full table, resident
                pl.BlockSpec((2, D), lambda i: (0, 0)),    # [gamma; beta]
                pl.BlockSpec((D, 1), lambda i: (0, 0)),    # folded head weight
                pl.BlockSpec(memory_space=pltpu.MemorySpace.SMEM),  # folded bias
            ],
            out_specs=out_specs,
            compiler_params=cparams,
            cost_estimate=cost,
        )(labels2, emb_table, consts, wg, bias)
    else:
        # Large-table fallback: gather hoisted to XLA, kernel = LN + head only.
        # TODO(synk): fuse the gather in-kernel (scalar-prefetched labels +
        # per-row make_async_copy from an HBM-resident table) to cut the ~3x
        # per-row HBM traffic of this path.
        rows = jnp.take(emb_table, labels, axis=0)             # (B_pad, D)
        rows_tile_bytes = TB * D * rows.dtype.itemsize
        need = (2 * rows_tile_bytes + 2 * x_tile_bytes
                + 4 * TB * 4 + const_bytes + 4 * _MiB)
        vmem_limit = min(int(_VMEM_CAP_BYTES * 0.9), max(need, 32 * _MiB))
        cparams = pltpu.CompilerParams(
            dimension_semantics=("parallel",), vmem_limit_bytes=vmem_limit)
        cost = pl.CostEstimate(
            flops=10 * B_pad * D,
            transcendentals=2 * B_pad,
            bytes_accessed=B_pad * D * rows.dtype.itemsize + const_bytes + out_bytes)
        x_pad, u_pad = pl.pallas_call(
            _ln_head_kernel,
            out_shape=out_shape,
            grid=(n_tiles,),
            in_specs=[
                pl.BlockSpec((TB, D), lambda i: (i, 0)),   # gathered rows tile
                pl.BlockSpec((2, D), lambda i: (0, 0)),
                pl.BlockSpec((D, 1), lambda i: (0, 0)),
                pl.BlockSpec(memory_space=pltpu.MemorySpace.SMEM),
            ],
            out_specs=out_specs,
            compiler_params=cparams,
            cost_estimate=cost,
        )(rows, consts, wg, bias)

    return x_pad[:B], u_pad[:B]


def _reference(class_labels, emb_table, ln_gamma, ln_beta, unc_w, unc_b):
    """Pure-JAX reference mirroring the PyTorch forward (eval mode)."""
    x = emb_table[class_labels]                                   # (B, D)
    mean = jnp.mean(x, axis=-1, keepdims=True)
    var = jnp.mean((x - mean) ** 2, axis=-1, keepdims=True)
    x = (x - mean) / jnp.sqrt(var + LN_EPS) * ln_gamma + ln_beta
    u = jax.nn.sigmoid(x @ unc_w.reshape(-1, 1) + unc_b)          # (B, 1)
    return x, u


if __name__ == "__main__":
    num_classes = 10
    embed_dim = 512   # module default; lane-aligned
    batch = 8

    key = jax.random.PRNGKey(0)
    k_emb, k_w, k_b, k_lbl = jax.random.split(key, 4)

    # nn.Embedding default init: N(0, 1)
    emb_table = jax.random.normal(k_emb, (num_classes, embed_dim), jnp.float32)
    # nn.LayerNorm default: gamma=1, beta=0
    ln_gamma = jnp.ones((embed_dim,), jnp.float32)
    ln_beta = jnp.zeros((embed_dim,), jnp.float32)
    # nn.Linear(embed_dim, 1) default: U(-1/sqrt(D), 1/sqrt(D))
    bound = 1.0 / (embed_dim ** 0.5)
    unc_w = jax.random.uniform(k_w, (embed_dim,), jnp.float32, -bound, bound)
    unc_b = jax.random.uniform(k_b, (1,), jnp.float32, -bound, bound)

    class_labels = jax.random.randint(k_lbl, (batch,), 0, num_classes,
                                      dtype=jnp.int32)

    x, uncertainty = improved_semantic_embedding(
        class_labels, emb_table, ln_gamma, ln_beta, unc_w, unc_b)
    jax.block_until_ready((x, uncertainty))

    x_ref, u_ref = _reference(class_labels, emb_table, ln_gamma, ln_beta,
                              unc_w, unc_b)
    assert x.shape == (batch, embed_dim) and uncertainty.shape == (batch, 1)
    assert jnp.allclose(x, x_ref, atol=1e-4, rtol=1e-4)
    assert jnp.allclose(uncertainty, u_ref, atol=1e-4, rtol=1e-4)

    print("KERNEL_OK")
</pallas_src>

<mosaic_0001>
module attributes {stable_mosaic.version = 11 : i64} {
  func.func @_embed_ln_head_kernel(%arg0: i32, %arg1: memref<8x1xi32, #tpu.memory_space<vmem>>, %arg2: memref<10x512xf32, #tpu.memory_space<vmem>>, %arg3: memref<2x512xf32, #tpu.memory_space<vmem>>, %arg4: memref<512x1xf32, #tpu.memory_space<vmem>>, %arg5: memref<1xf32, #tpu.memory_space<smem>>, %arg6: memref<8x512xf32, #tpu.memory_space<vmem>>, %arg7: memref<8x1xf32, #tpu.memory_space<vmem>>) attributes {dimension_semantics = [#tpu.dimension_semantics<parallel>], iteration_bounds = array<i64: 1>, scalar_prefetch = 0 : i64, scratch_operands = 0 : i64, tpu.core_type = #tpu.core_type<tc>, window_params = [{transform_indices = @transform_0, window_bounds = array<i64: 8, 1>}, {pipeline_mode = #tpu.pipeline_mode<synchronous>, transform_indices = @transform_1, window_bounds = array<i64: 10, 512>}, {pipeline_mode = #tpu.pipeline_mode<synchronous>, transform_indices = @transform_2, window_bounds = array<i64: 2, 512>}, {pipeline_mode = #tpu.pipeline_mode<synchronous>, transform_indices = @transform_3, window_bounds = array<i64: 512, 1>}, {transform_indices = @transform_4, window_bounds = array<i64: 1>}, {transform_indices = @transform_5, window_bounds = array<i64: 8, 512>}, {transform_indices = @transform_6, window_bounds = array<i64: 8, 1>}]} {
    %c0 = arith.constant 0 : index
    %c0_0 = arith.constant 0 : index
    %0 = vector.load %arg1[%c0, %c0_0] : memref<8x1xi32, #tpu.memory_space<vmem>>, vector<8x1xi32>
    %1 = tpu.iota {dimensions = array<i32: 1>} : vector<8x10xi32>
    %c0_i32 = arith.constant 0 : i32
    %2 = vector.broadcast %c0_i32 : i32 to vector<8x10xi32>
    %3 = arith.addi %1, %2 : vector<8x10xi32>
    %4 = vector.broadcast %0 : vector<8x1xi32> to vector<8x10xi32>
    %5 = arith.cmpi eq, %4, %3 : vector<8x10xi32>
    %6 = arith.extui %5 : vector<8x10xi1> to vector<8x10xi32>
    %7 = arith.sitofp %6 : vector<8x10xi32> to vector<8x10xf32>
    %c0_1 = arith.constant 0 : index
    %c0_2 = arith.constant 0 : index
    %8 = vector.load %arg2[%c0_1, %c0_2] : memref<10x512xf32, #tpu.memory_space<vmem>>, vector<10x512xf32>
    %cst = arith.constant dense<0.000000e+00> : vector<8x512xf32>
    %9 = tpu.matmul %7, %8, %cst {dimension_numbers = #tpu.dot_dimension_numbers<[1], [0], [0], [1], [0, 0, 1, 1], [], []>} : vector<8x10xf32>, vector<10x512xf32>, vector<8x512xf32> -> vector<8x512xf32>
    %cst_3 = arith.constant dense<0.000000e+00> : vector<8xf32>
    %10 = vector.multi_reduction <add>, %9, %cst_3 [1] : vector<8x512xf32> to vector<8xf32>
    %11 = vector.shape_cast %10 : vector<8xf32> to vector<8x1xf32>
    %12 = arith.mulf %9, %9 : vector<8x512xf32>
    %cst_4 = arith.constant dense<0.000000e+00> : vector<8xf32>
    %13 = vector.multi_reduction <add>, %12, %cst_4 [1] : vector<8x512xf32> to vector<8xf32>
    %14 = vector.shape_cast %13 : vector<8xf32> to vector<8x1xf32>
    %cst_5 = arith.constant 0.001953125 : f32
    %15 = vector.broadcast %cst_5 : f32 to vector<8x1xf32>
    %16 = arith.mulf %11, %15 : vector<8x1xf32>
    %cst_6 = arith.constant 0.001953125 : f32
    %17 = vector.broadcast %cst_6 : f32 to vector<8x1xf32>
    %18 = arith.mulf %14, %17 : vector<8x1xf32>
    %19 = arith.mulf %16, %16 : vector<8x1xf32>
    %20 = arith.subf %18, %19 : vector<8x1xf32>
    %cst_7 = arith.constant 9.99999974E-6 : f32
    %21 = vector.broadcast %cst_7 : f32 to vector<8x1xf32>
    %22 = arith.addf %20, %21 : vector<8x1xf32>
    %23 = math.rsqrt %22 : vector<8x1xf32>
    %24 = vector.broadcast %16 : vector<8x1xf32> to vector<8x512xf32>
    %25 = arith.subf %9, %24 : vector<8x512xf32>
    %26 = vector.broadcast %23 : vector<8x1xf32> to vector<8x512xf32>
    %27 = arith.mulf %25, %26 : vector<8x512xf32>
    %c0_8 = arith.constant 0 : index
    %c0_9 = arith.constant 0 : index
    %28 = vector.load %arg3[%c0_8, %c0_9] : memref<2x512xf32, #tpu.memory_space<vmem>>, vector<1x512xf32>
    %c1 = arith.constant 1 : index
    %c0_10 = arith.constant 0 : index
    %29 = vector.load %arg3[%c1, %c0_10] : memref<2x512xf32, #tpu.memory_space<vmem>>, vector<1x512xf32>
    %30 = vector.broadcast %28 : vector<1x512xf32> to vector<8x512xf32>
    %31 = arith.mulf %27, %30 : vector<8x512xf32>
    %32 = vector.broadcast %29 : vector<1x512xf32> to vector<8x512xf32>
    %33 = arith.addf %31, %32 : vector<8x512xf32>
    %c0_11 = arith.constant 0 : index
    %c0_12 = arith.constant 0 : index
    %34 = vector.load %arg6[%c0_11, %c0_12] : memref<8x512xf32, #tpu.memory_space<vmem>>, vector<8x512xf32>
    tpu.vector_store %arg6[%c0_11, %c0_12], %33 {strides = array<i32>} : memref<8x512xf32, #tpu.memory_space<vmem>>, vector<8x512xf32>,
    %c0_13 = arith.constant 0 : index
    %c0_14 = arith.constant 0 : index
    %35 = vector.load %arg4[%c0_13, %c0_14] : memref<512x1xf32, #tpu.memory_space<vmem>>, vector<512x1xf32>
    %cst_15 = arith.constant dense<0.000000e+00> : vector<8x1xf32>
    %36 = tpu.matmul %27, %35, %cst_15 {dimension_numbers = #tpu.dot_dimension_numbers<[1], [0], [0], [1], [0, 0, 1, 1], [], []>} : vector<8x512xf32>, vector<512x1xf32>, vector<8x1xf32> -> vector<8x1xf32>
    %c0_16 = arith.constant 0 : index
    %37 = memref.load %arg5[%c0_16] : memref<1xf32, #tpu.memory_space<smem>>
    %38 = vector.broadcast %37 : f32 to vector<8x1xf32>
    %39 = arith.addf %36, %38 : vector<8x1xf32>
    %40 = arith.negf %39 : vector<8x1xf32>
    %41 = math.exp %40 : vector<8x1xf32>
    %cst_17 = arith.constant 1.000000e+00 : f32
    %42 = vector.broadcast %cst_17 : f32 to vector<8x1xf32>
    %43 = arith.addf %42, %41 : vector<8x1xf32>
    %44 = arith.divf %42, %43 : vector<8x1xf32>
    %c0_18 = arith.constant 0 : index
    %c0_19 = arith.constant 0 : index
    %45 = vector.load %arg7[%c0_18, %c0_19] : memref<8x1xf32, #tpu.memory_space<vmem>>, vector<8x1xf32>
    tpu.vector_store %arg7[%c0_18, %c0_19], %44 {strides = array<i32>} : memref<8x1xf32, #tpu.memory_space<vmem>>, vector<8x1xf32>,
    return
  }
  func.func @transform_0(%arg0: i32) -> (i32, i32) {
    %c0_i32 = arith.constant 0 : i32
    %c0_i32_0 = arith.constant 0 : i32
    return %arg0, %c0_i32 : i32, i32
  }
  func.func @transform_1(%arg0: i32) -> (i32, i32) {
    %c0_i32 = arith.constant 0 : i32
    %c0_i32_0 = arith.constant 0 : i32
    %c0_i32_1 = arith.constant 0 : i32
    return %c0_i32, %c0_i32_0 : i32, i32
  }
  func.func @transform_2(%arg0: i32) -> (i32, i32) {
    %c0_i32 = arith.constant 0 : i32
    %c0_i32_0 = arith.constant 0 : i32
    %c0_i32_1 = arith.constant 0 : i32
    return %c0_i32, %c0_i32_0 : i32, i32
  }
  func.func @transform_3(%arg0: i32) -> (i32, i32) {
    %c0_i32 = arith.constant 0 : i32
    %c0_i32_0 = arith.constant 0 : i32
    %c0_i32_1 = arith.constant 0 : i32
    return %c0_i32, %c0_i32_0 : i32, i32
  }
  func.func @transform_4(%arg0: i32) -> i32 {
    %c0_i32 = arith.constant 0 : i32
    %c0_i32_0 = arith.constant 0 : i32
    return %c0_i32 : i32
  }
  func.func @transform_5(%arg0: i32) -> (i32, i32) {
    %c0_i32 = arith.constant 0 : i32
    %c0_i32_0 = arith.constant 0 : i32
    return %arg0, %c0_i32 : i32, i32
  }
  func.func @transform_6(%arg0: i32) -> (i32, i32) {
    %c0_i32 = arith.constant 0 : i32
    %c0_i32_0 = arith.constant 0 : i32
    return %arg0, %c0_i32 : i32, i32
  }
}

</mosaic_0001>

<llo_original>
// kernel: improved_semantic_embedding.1
$region0: #{improved_semantic_embedding.1}
  #allocation0 [shape = 'u32[]', space=smem, size = 0x4, offset = 0x4, fixed_abs, tag = 'smem constant byte address 0x4 - core index']
  #allocation1 [shape = 'u32[144,128]{1,0:T(1,128)}', space=vmem, size = 0x12000, scoped, tag = 'internal scratch']
  #allocation2 [shape = 'f32[1]{0:T(128)S(6)}', space=smem, size = 0x200, scoped, tag = 'scoped memory for improved_semantic_embedding.1']
  %s0 = inlined_call_operand.vmem [shape: s32[8,1], index: 0, kind: input, shape index: {}]
  %s1 = inlined_call_operand.vmem [shape: f32[10,512], index: 1, kind: input, shape index: {}]
  %s2 = inlined_call_operand.vmem [shape: f32[2,512], index: 2, kind: input, shape index: {}]
  %s3 = inlined_call_operand.vmem [shape: f32[512,1], index: 3, kind: input, shape index: {}]
  %s4 = inlined_call_operand.<no memory space> [shape: f32[1], index: 4, kind: input, shape index: {}]
  %s5 = inlined_call_operand.hbm [shape: f32[8,512], index: 5, kind: output, shape index: {0}]
  %s6 = inlined_call_operand.vmem [shape: f32[8,1], index: 6, kind: output, shape index: {1}]
  %7 = xla_tuple %s5, %s6
  %s8 = sld [smem:[#allocation0]]
  $region38: #{improved_semantic_embedding.1} parent=0
    _
  %s10 = ssub.s32 1, %s8
  %s11 = scalar_select 0, %s10, %s8
  %12 = sst [smem:[#allocation2]] %s4
  $region1: #{improved_semantic_embedding.1} parent=0
    #allocation3 [shape = 'u8[16384]{0}', space=vmem, size = 0x4000, scoped, tag = 'output window, operand 0, single buffered']
    #allocation4 [shape = 's32[1]{0}', space=sflag, size = 0x4, scoped, tag = 'scoped memory for improved_semantic_embedding.1']
    %13 = vsyncpa [#allocation4], 0
    // Predicated region
    $region2: #{improved_semantic_embedding.1} parent=1 // pred_check
      _
    $region3: #{improved_semantic_embedding.1} parent=1 // pred_check_branch
      %15 = sbr.rel (0) target = $region5
    $region4: #{improved_semantic_embedding.1} parent=1 // pred_region
      _
    $region5: #{improved_semantic_embedding.1} parent=1 // pred_fallthru
      _
    // Predicated region
    $region6: #{improved_semantic_embedding.1} parent=1 // pred_check
      _
    $region7: #{improved_semantic_embedding.1} parent=1 // pred_check_branch
      %17 = sbr.rel (0) target = $region9
    $region8: #{improved_semantic_embedding.1} parent=1 // pred_region
      _
    $region9: #{improved_semantic_embedding.1} parent=1 // pred_fallthru
      _
    // Predicated region
    $region10: #{improved_semantic_embedding.1} parent=1 // pred_check
      _
    $region11: #{improved_semantic_embedding.1} parent=1 // pred_check_branch
      %19 = sbr.rel (0) target = $region13
    $region12: #{improved_semantic_embedding.1} parent=1 // pred_region
      _
    $region13: #{improved_semantic_embedding.1} parent=1 // pred_fallthru
      _
    // Predicated region
    $region14: #{improved_semantic_embedding.1} parent=1 // pred_check
      _
    $region15: #{improved_semantic_embedding.1} parent=1 // pred_check_branch
      %21 = sbr.rel (0) target = $region17
    $region16: #{improved_semantic_embedding.1} parent=1 // pred_region
      _
    $region17: #{improved_semantic_embedding.1} parent=1 // pred_fallthru
      _
    // Predicated region
    $region18: #{improved_semantic_embedding.1} parent=1 // pred_check
      _
    $region19: #{improved_semantic_embedding.1} parent=1 // pred_check_branch
      %23 = sbr.rel (0) target = $region21
    $region20: #{improved_semantic_embedding.1} parent=1 // pred_region
      _
    $region21: #{improved_semantic_embedding.1} parent=1 // pred_fallthru
      _
    %v24 = vld [vmem:[%s0] sm:$0xff]
    %v25 = vlaneseq
    %v26 = vand.u32 %v25, 127
    %27 = vset.pattern.permute.xlu0 0
    %28 = vperm.xlu0 %27, %v24
    %v29 = vpop.permute.xlu0 %28
    %vm30 = vcmp.eq.s32.totalorder %v29, %v26
    %v31 = vsel %vm30, 1, 0
    %v32 = vcvt.s32.f32 %v31
    %v33 = vld [vmem:[%s1] sm:$0xff]
    %v34 = vld [vmem:[%s1 + $0x8] sm:$0xff]
    %v35 = vld [vmem:[%s1 + $0x10] sm:$0xff]
    %v36 = vld [vmem:[%s1 + $0x18] sm:$0xff]
    %v37 = vld [vmem:[%s1 + $0x20] sm:$0x3]
    %v38 = vld [vmem:[%s1 + $0x28] sm:$0x3]
    %v39 = vld [vmem:[%s1 + $0x30] sm:$0x3]
    %v40 = vld [vmem:[%s1 + $0x38] sm:$0x3]
    %vm41 = vcmask 80896
    %v43 = vsel %vm41, %v32, 0
    %vm45 = vcmask 1041408
    %v47 = vsel %vm45, %v37, 0
    %v50 = vsel %vm45, %v38, 0
    %v53 = vsel %vm45, %v39, 0
    %v56 = vsel %vm45, %v40, 0
    %58 = vmatprep.subr.mxu0 %v34
    %59 = vmatpush1.msra.mxu0 %v33
    %60 = vmatprep.subr.mxu0 %v50
    %61 = vmatpush1.msra.mxu0 %v47
    %62 = vmatprep.subr.mxu0 0.0
    %63 = vmatpush1.msra.mxu0 0.0
    %64 = vmatprep.subr.mxu0 0.0
    %65 = vmatpush1.msra.mxu0 0.0
    %66 = vmatprep.subr.mxu0 0.0
    %67 = vmatpush1.msra.mxu0 0.0
    %68 = vmatprep.subr.mxu0 0.0
    %69 = vmatpush1.msra.mxu0 0.0
    %70 = vmatprep.subr.mxu0 0.0
    %71 = vmatpush1.msra.mxu0 0.0
    %72 = vmatprep.subr.mxu0 0.0
    %73 = vmatpush1.msra.mxu0 0.0
    %74 = vmatprep.subr.mxu0 0.0
    %75 = vmatpush1.msra.mxu0 0.0
    %76 = vmatprep.subr.mxu0 0.0
    %77 = vmatpush1.msra.mxu0 0.0
    %78 = vmatprep.subr.mxu0 0.0
    %79 = vmatpush1.msra.mxu0 0.0
    %80 = vmatprep.subr.mxu0 0.0
    %81 = vmatpush1.msra.mxu0 0.0
    %82 = vmatprep.subr.mxu0 0.0
    %83 = vmatpush1.msra.mxu0 0.0
    %84 = vmatprep.subr.mxu0 0.0
    %85 = vmatpush1.msra.mxu0 0.0
    %86 = vmatprep.subr.mxu0 0.0
    %87 = vmatpush1.msra.mxu0 0.0
    %88 = vmatprep.subr.mxu0 0.0
    %89 = vmatpush1.msra.mxu0 0.0
    %90 = vmatprep.subr.mxu0 0.0
    %91 = vmatpush1.msra.mxu0 0.0
    %92 = vmatprep.subr.mxu0 0.0
    %93 = vmatpush1.msra.mxu0 0.0
    %94 = vmatprep.subr.mxu0 0.0
    %95 = vmatpush1.msra.mxu0 0.0
    %96 = vmatprep.subr.mxu0 0.0
    %97 = vmatpush1.msra.mxu0 0.0
    %98 = vmatprep.subr.mxu0 0.0
    %99 = vmatpush1.msra.mxu0 0.0
    %100 = vmatprep.subr.mxu0 0.0
    %101 = vmatpush1.msra.mxu0 0.0
    %102 = vmatprep.subr.mxu0 0.0
    %103 = vmatpush1.msra.mxu0 0.0
    %104 = vmatprep.subr.mxu0 0.0
    %105 = vmatpush1.msra.mxu0 0.0
    %106 = vmatprep.subr.mxu0 0.0
    %107 = vmatpush1.msra.mxu0 0.0
    %108 = vmatprep.subr.mxu0 0.0
    %109 = vmatpush1.msra.mxu0 0.0
    %110 = vmatprep.subr.mxu0 0.0
    %111 = vmatpush1.msra.mxu0 0.0
    %112 = vmatprep.subr.mxu0 0.0
    %113 = vmatpush1.msra.mxu0 0.0
    %114 = vmatprep.subr.mxu0 0.0
    %115 = vmatpush1.msra.mxu0 0.0
    %116 = vmatprep.subr.mxu0 0.0
    %117 = vmatpush1.msra.mxu0 0.0
    %118 = vmatprep.subr.mxu0 0.0
    %119 = vmatpush1.msra.mxu0 0.0
    %120 = vmatprep.subr.mxu0 0.0
    %121 = vmatpush1.msra.mxu0 0.0
    %122 = vmatprep.mubr.f32.mxu0 0.0
    %123 = vmatmul.mubr.f32.gmra.mrb[0].mxu0 %v43
    %v124 = vpop.f32.mrb[0].mxu0
    %v125 = vadd.f32 0.0, %v124
    %v126 = vpop.f32.mrb[0].mxu0
    %v127 = vadd.f32 0.0, %v126
    %128 = vdwg.mxu0
    %129 = vmatprep.subr.mxu0 %v36
    %130 = vmatpush1.msra.mxu0 %v35
    %131 = vmatprep.subr.mxu0 %v56
    %132 = vmatpush1.msra.mxu0 %v53
    %133 = vmatprep.subr.mxu0 0.0
    %134 = vmatpush1.msra.mxu0 0.0
    %135 = vmatprep.subr.mxu0 0.0
    %136 = vmatpush1.msra.mxu0 0.0
    %137 = vmatprep.subr.mxu0 0.0
    %138 = vmatpush1.msra.mxu0 0.0
    %139 = vmatprep.subr.mxu0 0.0
    %140 = vmatpush1.msra.mxu0 0.0
    %141 = vmatprep.subr.mxu0 0.0
    %142 = vmatpush1.msra.mxu0 0.0
    %143 = vmatprep.subr.mxu0 0.0
    %144 = vmatpush1.msra.mxu0 0.0
    %145 = vmatprep.subr.mxu0 0.0
    %146 = vmatpush1.msra.mxu0 0.0
    %147 = vmatprep.subr.mxu0 0.0
    %148 = vmatpush1.msra.mxu0 0.0
    %149 = vmatprep.subr.mxu0 0.0
    %150 = vmatpush1.msra.mxu0 0.0
    %151 = vmatprep.subr.mxu0 0.0
    %152 = vmatpush1.msra.mxu0 0.0
    %153 = vmatprep.subr.mxu0 0.0
    %154 = vmatpush1.msra.mxu0 0.0
    %155 = vmatprep.subr.mxu0 0.0
    %156 = vmatpush1.msra.mxu0 0.0
    %157 = vmatprep.subr.mxu0 0.0
    %158 = vmatpush1.msra.mxu0 0.0
    %159 = vmatprep.subr.mxu0 0.0
    %160 = vmatpush1.msra.mxu0 0.0
    %161 = vmatprep.subr.mxu0 0.0
    %162 = vmatpush1.msra.mxu0 0.0
    %163 = vmatprep.subr.mxu0 0.0
    %164 = vmatpush1.msra.mxu0 0.0
    %165 = vmatprep.subr.mxu0 0.0
    %166 = vmatpush1.msra.mxu0 0.0
    %167 = vmatprep.subr.mxu0 0.0
    %168 = vmatpush1.msra.mxu0 0.0
    %169 = vmatprep.subr.mxu0 0.0
    %170 = vmatpush1.msra.mxu0 0.0
    %171 = vmatprep.subr.mxu0 0.0
    %172 = vmatpush1.msra.mxu0 0.0
    %173 = vmatprep.subr.mxu0 0.0
    %174 = vmatpush1.msra.mxu0 0.0
    %175 = vmatprep.subr.mxu0 0.0
    %176 = vmatpush1.msra.mxu0 0.0
    %177 = vmatprep.subr.mxu0 0.0
    %178 = vmatpush1.msra.mxu0 0.0
    %179 = vmatprep.subr.mxu0 0.0
    %180 = vmatpush1.msra.mxu0 0.0
    %181 = vmatprep.subr.mxu0 0.0
    %182 = vmatpush1.msra.mxu0 0.0
    %183 = vmatprep.subr.mxu0 0.0
    %184 = vmatpush1.msra.mxu0 0.0
    %185 = vmatprep.subr.mxu0 0.0
    %186 = vmatpush1.msra.mxu0 0.0
    %187 = vmatprep.subr.mxu0 0.0
    %188 = vmatpush1.msra.mxu0 0.0
    %189 = vmatprep.subr.mxu0 0.0
    %190 = vmatpush1.msra.mxu0 0.0
    %191 = vmatprep.subr.mxu0 0.0
    %192 = vmatpush1.msra.mxu0 0.0
    %193 = vmatprep.mubr.f32.mxu0 0.0
    %194 = vmatmul.mubr.f32.gmra.mrb[0].mxu0 %v43
    %v195 = vpop.f32.mrb[0].mxu0
    %v196 = vadd.f32 0.0, %v195
    %v197 = vpop.f32.mrb[0].mxu0
    %v198 = vadd.f32 0.0, %v197
    %199 = vdwg.mxu0
    %v200 = vadd.f32 %v125, %v127
    %v201 = vadd.f32 %v200, %v196
    %v202 = vadd.f32 %v201, %v198
    %203 = vadd.xlane.f32.xlu0 %v202
    %v204 = vpop.xlane.xlu0 %203
    %v205 = vmul.f32 %v125, %v125
    %v206 = vmul.f32 %v127, %v127
    %v207 = vmul.f32 %v196, %v196
    %v208 = vmul.f32 %v198, %v198
    %v209 = vadd.f32 %v205, %v206
    %v210 = vadd.f32 %v209, %v207
    %v211 = vadd.f32 %v210, %v208
    %212 = vadd.xlane.f32.xlu0 %v211
    %v213 = vpop.xlane.xlu0 %212
    %v214 = vmul.f32 %v204, 0.001953125
    %v215 = vmul.f32 %v213, 0.001953125
    %v216 = vmul.f32 %v214, %v214
    %v217 = vsub.f32 %v215, %v216
    %v218 = vadd.f32 %v217, 1e-05
    %v219 = vrsqrt.pop %v218
    %v220 = vsub.f32 %v125, %v214
    %v221 = vsub.f32 %v127, %v214
    %v222 = vsub.f32 %v196, %v214
    %v223 = vsub.f32 %v198, %v214
    %v224 = vmul.f32 %v220, %v219
    %v225 = vmul.f32 %v221, %v219
    %v226 = vmul.f32 %v222, %v219
    %v227 = vmul.f32 %v223, %v219
    %v228 = vld [vmem:[%s2] ss:$2 sm:$0xf]
    %s229 = scalar_lea.vmem %s2, 1
    %v230 = vld [vmem:[%s229] ss:$2 sm:$0xf]
    %v232 = vlaneseq
    %v233 = vshrl.u32 %v232, 7
    %v234 = vsub.s32 0, %v233
    %v235 = vrot.slane %v228, %v234
    %v236 = vlaneseq
    %v237 = vshrl.u32 %v236, 7
    %v238 = vsub.s32 1, %v237
    %v239 = vrot.slane %v228, %v238
    %v240 = vlaneseq
    %v241 = vshrl.u32 %v240, 7
    %v242 = vsub.s32 2, %v241
    %v243 = vrot.slane %v228, %v242
    %v244 = vlaneseq
    %v245 = vshrl.u32 %v244, 7
    %v246 = vsub.s32 3, %v245
    %v247 = vrot.slane %v228, %v246
    %v252 = vmul.f32 %v224, %v235
    %v253 = vmul.f32 %v225, %v239
    %v254 = vmul.f32 %v226, %v243
    %v255 = vmul.f32 %v227, %v247
    %v257 = vlaneseq
    %v258 = vshrl.u32 %v257, 7
    %v259 = vsub.s32 0, %v258
    %v260 = vrot.slane %v230, %v259
    %v261 = vlaneseq
    %v262 = vshrl.u32 %v261, 7
    %v263 = vsub.s32 1, %v262
    %v264 = vrot.slane %v230, %v263
    %v265 = vlaneseq
    %v266 = vshrl.u32 %v265, 7
    %v267 = vsub.s32 2, %v266
    %v268 = vrot.slane %v230, %v267
    %v269 = vlaneseq
    %v270 = vshrl.u32 %v269, 7
    %v271 = vsub.s32 3, %v270
    %v272 = vrot.slane %v230, %v271
    %v277 = vadd.f32 %v252, %v260
    %v278 = vadd.f32 %v253, %v264
    %v279 = vadd.f32 %v254, %v268
    %v280 = vadd.f32 %v255, %v272
    %281 = vst [vmem:[#allocation3] sm:$0xff] %v277
    %282 = vst [vmem:[#allocation3 + $0x8] sm:$0xff] %v278
    %283 = vst [vmem:[#allocation3 + $0x10] sm:$0xff] %v279
    %284 = vst [vmem:[#allocation3 + $0x18] sm:$0xff] %v280
    %v285 = vld [vmem:[%s3] sm:$0xff]
    %v286 = vld [vmem:[%s3 + $0x8] sm:$0xff]
    %v287 = vld [vmem:[%s3 + $0x10] sm:$0xff]
    %v288 = vld [vmem:[%s3 + $0x18] sm:$0xff]
    %v289 = vld [vmem:[%s3 + $0x20] sm:$0xff]
    %v290 = vld [vmem:[%s3 + $0x28] sm:$0xff]
    %v291 = vld [vmem:[%s3 + $0x30] sm:$0xff]
    %v292 = vld [vmem:[%s3 + $0x38] sm:$0xff]
    %v293 = vld [vmem:[%s3 + $0x40] sm:$0xff]
    %v294 = vld [vmem:[%s3 + $0x48] sm:$0xff]
    %v295 = vld [vmem:[%s3 + $0x50] sm:$0xff]
    %v296 = vld [vmem:[%s3 + $0x58] sm:$0xff]
    %v297 = vld [vmem:[%s3 + $0x60] sm:$0xff]
    %v298 = vld [vmem:[%s3 + $0x68] sm:$0xff]
    %v299 = vld [vmem:[%s3 + $0x70] sm:$0xff]
    %v300 = vld [vmem:[%s3 + $0x78] sm:$0xff]
    %v301 = vld [vmem:[%s3 + $0x80] sm:$0xff]
    %v302 = vld [vmem:[%s3 + $0x88] sm:$0xff]
    %v303 = vld [vmem:[%s3 + $0x90] sm:$0xff]
    %v304 = vld [vmem:[%s3 + $0x98] sm:$0xff]
    %v305 = vld [vmem:[%s3 + $0xa0] sm:$0xff]
    %v306 = vld [vmem:[%s3 + $0xa8] sm:$0xff]
    %v307 = vld [vmem:[%s3 + $0xb0] sm:$0xff]
    %v308 = vld [vmem:[%s3 + $0xb8] sm:$0xff]
    %v309 = vld [vmem:[%s3 + $0xc0] sm:$0xff]
    %v310 = vld [vmem:[%s3 + $0xc8] sm:$0xff]
    %v311 = vld [vmem:[%s3 + $0xd0] sm:$0xff]
    %v312 = vld [vmem:[%s3 + $0xd8] sm:$0xff]
    %v313 = vld [vmem:[%s3 + $0xe0] sm:$0xff]
    %v314 = vld [vmem:[%s3 + $0xe8] sm:$0xff]
    %v315 = vld [vmem:[%s3 + $0xf0] sm:$0xff]
    %v316 = vld [vmem:[%s3 + $0xf8] sm:$0xff]
    %v317 = vld [vmem:[%s3 + $0x100] sm:$0xff]
    %v318 = vld [vmem:[%s3 + $0x108] sm:$0xff]
    %v319 = vld [vmem:[%s3 + $0x110] sm:$0xff]
    %v320 = vld [vmem:[%s3 + $0x118] sm:$0xff]
    %v321 = vld [vmem:[%s3 + $0x120] sm:$0xff]
    %v322 = vld [vmem:[%s3 + $0x128] sm:$0xff]
    %v323 = vld [vmem:[%s3 + $0x130] sm:$0xff]
    %v324 = vld [vmem:[%s3 + $0x138] sm:$0xff]
    %v325 = vld [vmem:[%s3 + $0x140] sm:$0xff]
    %v326 = vld [vmem:[%s3 + $0x148] sm:$0xff]
    %v327 = vld [vmem:[%s3 + $0x150] sm:$0xff]
    %v328 = vld [vmem:[%s3 + $0x158] sm:$0xff]
    %v329 = vld [vmem:[%s3 + $0x160] sm:$0xff]
    %v330 = vld [vmem:[%s3 + $0x168] sm:$0xff]
    %v331 = vld [vmem:[%s3 + $0x170] sm:$0xff]
    %v332 = vld [vmem:[%s3 + $0x178] sm:$0xff]
    %v333 = vld [vmem:[%s3 + $0x180] sm:$0xff]
    %v334 = vld [vmem:[%s3 + $0x188] sm:$0xff]
    %v335 = vld [vmem:[%s3 + $0x190] sm:$0xff]
    %v336 = vld [vmem:[%s3 + $0x198] sm:$0xff]
    %v337 = vld [vmem:[%s3 + $0x1a0] sm:$0xff]
    %v338 = vld [vmem:[%s3 + $0x1a8] sm:$0xff]
    %v339 = vld [vmem:[%s3 + $0x1b0] sm:$0xff]
    %v340 = vld [vmem:[%s3 + $0x1b8] sm:$0xff]
    %v341 = vld [vmem:[%s3 + $0x1c0] sm:$0xff]
    %v342 = vld [vmem:[%s3 + $0x1c8] sm:$0xff]
    %v343 = vld [vmem:[%s3 + $0x1d0] sm:$0xff]
    %v344 = vld [vmem:[%s3 + $0x1d8] sm:$0xff]
    %v345 = vld [vmem:[%s3 + $0x1e0] sm:$0xff]
    %v346 = vld [vmem:[%s3 + $0x1e8] sm:$0xff]
    %v347 = vld [vmem:[%s3 + $0x1f0] sm:$0xff]
    %v348 = vld [vmem:[%s3 + $0x1f8] sm:$0xff]
    %s349 = sld [smem:[#allocation2]]
    %v350 = vstv %s349
    %351 = vmatprep.subr.mxu0 0.0
    %352 = vmatpush1.msra.mxu0 %v285
    %353 = vmatprep.subr.mxu0 0.0
    %354 = vmatpush1.msra.mxu0 %v286
    %355 = vmatprep.subr.mxu0 0.0
    %356 = vmatpush1.msra.mxu0 %v287
    %357 = vmatprep.subr.mxu0 0.0
    %358 = vmatpush1.msra.mxu0 %v288
    %359 = vmatprep.subr.mxu0 0.0
    %360 = vmatpush1.msra.mxu0 %v289
    %361 = vmatprep.subr.mxu0 0.0
    %362 = vmatpush1.msra.mxu0 %v290
    %363 = vmatprep.subr.mxu0 0.0
    %364 = vmatpush1.msra.mxu0 %v291
    %365 = vmatprep.subr.mxu0 0.0
    %366 = vmatpush1.msra.mxu0 %v292
    %367 = vmatprep.subr.mxu0 0.0
    %368 = vmatpush1.msra.mxu0 %v293
    %369 = vmatprep.subr.mxu0 0.0
    %370 = vmatpush1.msra.mxu0 %v294
    %371 = vmatprep.subr.mxu0 0.0
    %372 = vmatpush1.msra.mxu0 %v295
    %373 = vmatprep.subr.mxu0 0.0
    %374 = vmatpush1.msra.mxu0 %v296
    %375 = vmatprep.subr.mxu0 0.0
    %376 = vmatpush1.msra.mxu0 %v297
    %377 = vmatprep.subr.mxu0 0.0
    %378 = vmatpush1.msra.mxu0 %v298
    %379 = vmatprep.subr.mxu0 0.0
    %380 = vmatpush1.msra.mxu0 %v299
    %381 = vmatprep.subr.mxu0 0.0
    %382 = vmatpush1.msra.mxu0 %v300
    %383 = vmatprep.subr.mxu0 0.0
    %384 = vmatpush1.msra.mxu0 %v301
    %385 = vmatprep.subr.mxu0 0.0
    %386 = vmatpush1.msra.mxu0 %v302
    %387 = vmatprep.subr.mxu0 0.0
    %388 = vmatpush1.msra.mxu0 %v303
    %389 = vmatprep.subr.mxu0 0.0
    %390 = vmatpush1.msra.mxu0 %v304
    %391 = vmatprep.subr.mxu0 0.0
    %392 = vmatpush1.msra.mxu0 %v305
    %393 = vmatprep.subr.mxu0 0.0
    %394 = vmatpush1.msra.mxu0 %v306
    %395 = vmatprep.subr.mxu0 0.0
    %396 = vmatpush1.msra.mxu0 %v307
    %397 = vmatprep.subr.mxu0 0.0
    %398 = vmatpush1.msra.mxu0 %v308
    %399 = vmatprep.subr.mxu0 0.0
    %400 = vmatpush1.msra.mxu0 %v309
    %401 = vmatprep.subr.mxu0 0.0
    %402 = vmatpush1.msra.mxu0 %v310
    %403 = vmatprep.subr.mxu0 0.0
    %404 = vmatpush1.msra.mxu0 %v311
    %405 = vmatprep.subr.mxu0 0.0
    %406 = vmatpush1.msra.mxu0 %v312
    %407 = vmatprep.subr.mxu0 0.0
    %408 = vmatpush1.msra.mxu0 %v313
    %409 = vmatprep.subr.mxu0 0.0
    %410 = vmatpush1.msra.mxu0 %v314
    %411 = vmatprep.subr.mxu0 0.0
    %412 = vmatpush1.msra.mxu0 %v315
    %413 = vmatprep.subr.mxu0 0.0
    %414 = vmatpush1.msra.mxu0 %v316
    %415 = vmatprep.mubr.f32.mxu0 %v225
    %416 = vmatmul.mubr.f32.gmra.mrb[0].mxu0 %v224
    %v417 = vpop.f32.mrb[0].mxu0
    %v418 = vadd.f32 %v350, %v417
    %v419 = vpop.f32.mrb[0].mxu0
    %420 = vdwg.mxu0
    %421 = vmatprep.subr.mxu0 0.0
    %422 = vmatpush1.msra.mxu0 %v317
    %423 = vmatprep.subr.mxu0 0.0
    %424 = vmatpush1.msra.mxu0 %v318
    %425 = vmatprep.subr.mxu0 0.0
    %426 = vmatpush1.msra.mxu0 %v319
    %427 = vmatprep.subr.mxu0 0.0
    %428 = vmatpush1.msra.mxu0 %v320
    %429 = vmatprep.subr.mxu0 0.0
    %430 = vmatpush1.msra.mxu0 %v321
    %431 = vmatprep.subr.mxu0 0.0
    %432 = vmatpush1.msra.mxu0 %v322
    %433 = vmatprep.subr.mxu0 0.0
    %434 = vmatpush1.msra.mxu0 %v323
    %435 = vmatprep.subr.mxu0 0.0
    %436 = vmatpush1.msra.mxu0 %v324
    %437 = vmatprep.subr.mxu0 0.0
    %438 = vmatpush1.msra.mxu0 %v325
    %439 = vmatprep.subr.mxu0 0.0
    %440 = vmatpush1.msra.mxu0 %v326
    %441 = vmatprep.subr.mxu0 0.0
    %442 = vmatpush1.msra.mxu0 %v327
    %443 = vmatprep.subr.mxu0 0.0
    %444 = vmatpush1.msra.mxu0 %v328
    %445 = vmatprep.subr.mxu0 0.0
    %446 = vmatpush1.msra.mxu0 %v329
    %447 = vmatprep.subr.mxu0 0.0
    %448 = vmatpush1.msra.mxu0 %v330
    %449 = vmatprep.subr.mxu0 0.0
    %450 = vmatpush1.msra.mxu0 %v331
    %451 = vmatprep.subr.mxu0 0.0
    %452 = vmatpush1.msra.mxu0 %v332
    %453 = vmatprep.subr.mxu0 0.0
    %454 = vmatpush1.msra.mxu0 %v333
    %455 = vmatprep.subr.mxu0 0.0
    %456 = vmatpush1.msra.mxu0 %v334
    %457 = vmatprep.subr.mxu0 0.0
    %458 = vmatpush1.msra.mxu0 %v335
    %459 = vmatprep.subr.mxu0 0.0
    %460 = vmatpush1.msra.mxu0 %v336
    %461 = vmatprep.subr.mxu0 0.0
    %462 = vmatpush1.msra.mxu0 %v337
    %463 = vmatprep.subr.mxu0 0.0
    %464 = vmatpush1.msra.mxu0 %v338
    %465 = vmatprep.subr.mxu0 0.0
    %466 = vmatpush1.msra.mxu0 %v339
    %467 = vmatprep.subr.mxu0 0.0
    %468 = vmatpush1.msra.mxu0 %v340
    %469 = vmatprep.subr.mxu0 0.0
    %470 = vmatpush1.msra.mxu0 %v341
    %471 = vmatprep.subr.mxu0 0.0
    %472 = vmatpush1.msra.mxu0 %v342
    %473 = vmatprep.subr.mxu0 0.0
    %474 = vmatpush1.msra.mxu0 %v343
    %475 = vmatprep.subr.mxu0 0.0
    %476 = vmatpush1.msra.mxu0 %v344
    %477 = vmatprep.subr.mxu0 0.0
    %478 = vmatpush1.msra.mxu0 %v345
    %479 = vmatprep.subr.mxu0 0.0
    %480 = vmatpush1.msra.mxu0 %v346
    %481 = vmatprep.subr.mxu0 0.0
    %482 = vmatpush1.msra.mxu0 %v347
    %483 = vmatprep.subr.mxu0 0.0
    %484 = vmatpush1.msra.mxu0 %v348
    %485 = vmatprep.mubr.f32.mxu0 %v227
    %486 = vmatmul.mubr.f32.gmra.mrb[0].mxu0 %v226
    %v487 = vpop.f32.mrb[0].mxu0
    %v488 = vadd.f32 %v418, %v487
    %v489 = vpop.f32.mrb[0].mxu0
    %490 = vdwg.mxu0
    %v491 = vxor.u32 %v488, 2147483648
    %v492 = vmul.f32 %v491, 1.442695
    %v493 = vpow.pop %v492
    %v494 = vadd.f32 %v493, 1.0
    %v495 = vrcp.pop %v494
    %v496 = vmul.f32 1.0, %v495
    %vm497 = vcmask 7168
    %498 = vst.msk [vmem:[%s6] sm:$0xff] %vm497, %v496
    // Predicated region
    $region22: #{improved_semantic_embedding.1} parent=1 // pred_check
      _
    $region23: #{improved_semantic_embedding.1} parent=1 // pred_check_branch
      %500 = sbr.rel (0) target = $region25
    $region24: #{improved_semantic_embedding.1} parent=1 // pred_region
      %s502 = ssub.s32 512, 512
      %503 = vsyncadd [#allocation4], %s502
      %s505 = sshll.u32 [#allocation3], 4
      %s506 = int_to_ptr.vmem [resolvable:$true] %s505
      %508 = dma.vmem_to_hbm [thread:$0]  %s506, 512, %s5, [#allocation4]
    $region25: #{improved_semantic_embedding.1} parent=1 // pred_fallthru
      _
    // Predicated region
    $region26: #{improved_semantic_embedding.1} parent=1 // pred_check
      _
    $region27: #{improved_semantic_embedding.1} parent=1 // pred_check_branch
      %510 = sbr.rel (0) target = $region29
    $region28: #{improved_semantic_embedding.1} parent=1 // pred_region
      _
    $region29: #{improved_semantic_embedding.1} parent=1 // pred_fallthru
      _
    // Predicated region
    $region30: #{improved_semantic_embedding.1} parent=1 // pred_check
      _
    $region31: #{improved_semantic_embedding.1} parent=1 // pred_check_branch
      %512 = sbr.rel (0) target = $region33
    $region32: #{improved_semantic_embedding.1} parent=1 // pred_region
      %513 = dma.done [#allocation4], 512
    $region33: #{improved_semantic_embedding.1} parent=1 // pred_fallthru
      _
    // Predicated region
    $region34: #{improved_semantic_embedding.1} parent=1 // pred_check
      _
    $region35: #{improved_semantic_embedding.1} parent=1 // pred_check_branch
      %515 = sbr.rel (0) target = $region37
    $region36: #{improved_semantic_embedding.1} parent=1 // pred_region
      _
    $region37: #{improved_semantic_embedding.1} parent=1 // pred_fallthru
      _
    %516 = vsyncpa [#allocation4], 1

</llo_original>
